<compile_context>
chip_gen: v5e
topology: v5e:2x2
jax: 0.10.0
libtpu: 0.0.40
codegen_flags: <defaults>
</compile_context>

<pallas_src>
import functools

import jax
import jax.numpy as jnp
from jax.experimental import pallas as pl
from jax.experimental.pallas import tpu as pltpu

_LANE = 128               # TPU lane width
_MAX_COLS = 1024          # lane-tile width (multiple of 128)
_MAX_ROWS_PER_TILE = 512  # sublane-tile height (multiple of 8)


def _identity_copy_kernel(x_ref, o_ref):
    # Pure pass-through: forward(data) -> data (placeholder for the abstract forward).
    o_ref[...] = x_ref[...]


def _choose_2d_layout(total: int):
    """Pick (rows, cols, pad) so the flat tensor becomes a lane-dense 2-D slab.

    cols is a multiple of 128 (<= _MAX_COLS) dividing the padded length, so every
    output store is an unmasked, lane-aligned vst.
    """
    pad = (-total) % _LANE
    t = total + pad
    m = t // _LANE
    d = 1
    for cand in range(min(_MAX_COLS // _LANE, m), 0, -1):
        if m % cand == 0:
            d = cand
            break
    cols = _LANE * d
    rows = t // cols
    return rows, cols, pad


@functools.partial(jax.jit, static_argnames=("training",))
def model_template_forward(x_nchw: jax.Array, training: bool = False) -> jax.Array:
    """Pallas realization of ModelTemplate.forward (abstract -> identity pass-through)."""
    del training
    orig_shape = x_nchw.shape
    total = x_nchw.size
    rows, cols, pad = _choose_2d_layout(total)

    flat = x_nchw.reshape(-1)
    if pad:
        flat = jnp.concatenate([flat, jnp.zeros((pad,), dtype=flat.dtype)])
    x2d = flat.reshape(rows, cols)

    # Tile sizes: <= 512 x 1024 (f32 tile <= 2 MiB; 2 in + 2 out double-buffers
    # <= 8 MiB VMEM -> fits default scoped VMEM on v5e/v6e/v7x).
    tm = rows if rows <= _MAX_ROWS_PER_TILE else _MAX_ROWS_PER_TILE
    tn = cols  # cols <= _MAX_COLS and is a multiple of 128
    grid = (pl.cdiv(rows, tm), pl.cdiv(cols, tn))

    out2d = pl.pallas_call(
        _identity_copy_kernel,
        out_shape=jax.ShapeDtypeStruct((rows, cols), x2d.dtype),
        grid=grid,
        in_specs=[pl.BlockSpec((tm, tn), lambda i, j: (i, j))],
        out_specs=pl.BlockSpec((tm, tn), lambda i, j: (i, j)),
        input_output_aliases={0: 0},
        compiler_params=pltpu.CompilerParams(
            dimension_semantics=("parallel", "parallel"),
        ),
    )(x2d)

    out_flat = out2d.reshape(-1)
    if pad:
        out_flat = out_flat[:total]
    return out_flat.reshape(orig_shape)


if __name__ == "__main__":
    key = jax.random.PRNGKey(0)

    # Small NCHW input consistent with a typical PyTorch module: batch=2, channels=4, 16x16 spatial.
    x = jax.random.normal(key, (2, 4, 16, 16), dtype=jnp.float32)
    y = jax.block_until_ready(model_template_forward(x, training=False))
    assert y.shape == x.shape and y.dtype == x.dtype
    assert bool(jnp.allclose(y, x))

    # Exercise the non-128-multiple (padded) path with an odd feature-map size.
    x2 = jax.random.normal(jax.random.PRNGKey(1), (2, 3, 7, 7), dtype=jnp.float32)
    y2 = jax.block_until_ready(model_template_forward(x2, training=False))
    assert y2.shape == x2.shape and y2.dtype == x2.dtype
    assert bool(jnp.allclose(y2, x2))

    print("KERNEL_OK")
</pallas_src>

<mosaic_0001>
module attributes {stable_mosaic.version = 11 : i64} {
  func.func @_identity_copy_kernel(%arg0: i32, %arg1: i32, %arg2: memref<2x1024xf32, #tpu.memory_space<vmem>>, %arg3: memref<2x1024xf32, #tpu.memory_space<vmem>>) attributes {dimension_semantics = [#tpu.dimension_semantics<parallel>, #tpu.dimension_semantics<parallel>], iteration_bounds = array<i64: 1, 1>, scalar_prefetch = 0 : i64, scratch_operands = 0 : i64, tpu.core_type = #tpu.core_type<tc>, window_params = [{transform_indices = @transform_0, window_bounds = array<i64: 2, 1024>}, {transform_indices = @transform_1, window_bounds = array<i64: 2, 1024>}]} {
    %c0 = arith.constant 0 : index
    %c0_0 = arith.constant 0 : index
    %0 = vector.load %arg2[%c0, %c0_0] : memref<2x1024xf32, #tpu.memory_space<vmem>>, vector<2x1024xf32>
    %c0_1 = arith.constant 0 : index
    %c0_2 = arith.constant 0 : index
    %1 = vector.load %arg3[%c0_1, %c0_2] : memref<2x1024xf32, #tpu.memory_space<vmem>>, vector<2x1024xf32>
    tpu.vector_store %arg3[%c0_1, %c0_2], %0 {strides = array<i32>} : memref<2x1024xf32, #tpu.memory_space<vmem>>, vector<2x1024xf32>,
    return
  }
  func.func @transform_0(%arg0: i32, %arg1: i32) -> (i32, i32) {
    %c0_i32 = arith.constant 0 : i32
    return %arg0, %arg1 : i32, i32
  }
  func.func @transform_1(%arg0: i32, %arg1: i32) -> (i32, i32) {
    %c0_i32 = arith.constant 0 : i32
    return %arg0, %arg1 : i32, i32
  }
}

</mosaic_0001>

<llo_original>
// kernel: model_template_forward.1
$region0: #{model_template_forward.1}
  #allocation0 [shape = 'u32[]', space=smem, size = 0x4, offset = 0x4, fixed_abs, tag = 'smem constant byte address 0x4 - core index']
  #allocation1 [shape = 'u32[72,128]{1,0:T(1,128)}', space=vmem, size = 0x9000, scoped, tag = 'internal scratch']
  %s0 = inlined_call_operand.vmem [shape: f32[2,1024], index: 0, kind: input, shape index: {}, may-alias: {0,1}]
  %s1 = inlined_call_operand.vmem [shape: f32[2,1024], index: 1, kind: output, shape index: {}, may-alias: {0,1}]
  %s2 = sld [smem:[#allocation0]]
  $region14: #{model_template_forward.1} parent=0
    _
  %s4 = ssub.s32 1, %s2
  %s5 = scalar_select 0, %s4, %s2
  // Predicated region
  $region2: #{model_template_forward.1} parent=0 // pred_check
    _
  $region3: #{model_template_forward.1} parent=0 // pred_check_branch
    %7 = sbr.rel (0) target = $region5
  $region4: #{model_template_forward.1} parent=0 // pred_region
    _
  $region5: #{model_template_forward.1} parent=0 // pred_fallthru
    _
  %v8 = vld [vmem:[%s0] sm:$0xff]
  %v9 = vld [vmem:[%s0 + $0x8] sm:$0xff]
  %10 = vst [vmem:[%s1] sm:$0xff] %v8
  %11 = vst [vmem:[%s1 + $0x8] sm:$0xff] %v9
  // Predicated region
  $region6: #{model_template_forward.1} parent=0 // pred_check
    _
  $region7: #{model_template_forward.1} parent=0 // pred_check_branch
    %13 = sbr.rel (0) target = $region9
  $region8: #{model_template_forward.1} parent=0 // pred_region
    _
  $region9: #{model_template_forward.1} parent=0 // pred_fallthru
    _
  // Predicated region
  $region10: #{model_template_forward.1} parent=0 // pred_check
    _
  $region11: #{model_template_forward.1} parent=0 // pred_check_branch
    %15 = sbr.rel (0) target = $region13
  $region12: #{model_template_forward.1} parent=0 // pred_region
    _
  $region13: #{model_template_forward.1} parent=0 // pred_fallthru
    _

</llo_original>
